<compile_context>
chip_gen: v5e
topology: v5e:2x2
jax: 0.10.0
libtpu: 0.0.40
codegen_flags: <defaults>
</compile_context>

<pallas_src>
import numpy as np
import jax
import jax.numpy as jnp
from jax.experimental import pallas as pl
from jax.experimental.pallas import tpu as pltpu


def _round_up(x, m):
    return ((x + m - 1) // m) * m


def _uniform_indices(seed_u32, pos_i32, num_candidates):
    """Counter-based hash (murmur3 fmix32) -> uniform int32 indices in [0, X)."""
    u = seed_u32 + pos_i32.astype(jnp.uint32) * jnp.uint32(0x9E3779B9)
    u = (u ^ (u >> jnp.uint32(16))) * jnp.uint32(0x85EBCA6B)
    u = (u ^ (u >> jnp.uint32(13))) * jnp.uint32(0xC2B2AE35)
    u = u ^ (u >> jnp.uint32(16))
    # Float-scaling map to [0, X): no integer modulo, no modulo bias (24 random bits).
    r24 = (u >> jnp.uint32(8)).astype(jnp.int32)                   # [0, 2^24)
    frac = r24.astype(jnp.float32) * jnp.float32(1.0 / (1 << 24))  # [0, 1)
    idx = (frac * jnp.float32(num_candidates)).astype(jnp.int32)
    return jnp.minimum(idx, jnp.int32(num_candidates - 1))


def _emb_gather_kernel(idx_ref, emb_ref, out_ref, acc_ref):
    """One grid step: (TS, TX) one-hot @ (TX, D_pad) table block -> f32 accumulator."""
    k = pl.program_id(1)

    @pl.when(k == 0)
    def _():
        acc_ref[...] = jnp.zeros_like(acc_ref)

    TX = emb_ref.shape[0]
    # Candidate indices covered by this X block: (1, TX) lane iota + block offset.
    cand = jax.lax.broadcasted_iota(jnp.int32, (1, TX), 1) + k * TX
    # (TS, 1) sampled-index column broadcast against (1, TX) -> exact one-hot mask.
    onehot = (idx_ref[...] == cand).astype(emb_ref.dtype)          # (TS, TX)
    # Canonical MXU matmul: [M=TS, K=TX] x [K=TX, N=D_pad], contraction on LHS last dim.
    acc_ref[...] += jax.lax.dot_general(
        onehot, emb_ref[...],
        dimension_numbers=(((1,), (0,)), ((), ())),
        preferred_element_type=jnp.float32)

    @pl.when(k == pl.num_programs(1) - 1)
    def _():
        out_ref[...] = acc_ref[...].astype(out_ref.dtype)


def _pick_ts(S):
    """Samples per grid step: 512 on 128-MiB-VMEM parts, 256 on v7x (64 MiB)."""
    ts = 512
    if jax.default_backend() == "tpu":
        try:
            if int(pltpu.get_tpu_info().vmem_capacity_bytes) <= (64 << 20):
                ts = 256
        except Exception:
            pass
    return min(ts, _round_up(S, 128))


def in_batch_negatives_sample(positive_ids, num_to_sample, cand_ids, cand_emb, seed=0):
    """JAX/Pallas equivalent of InBatchNegativesSampler.forward."""
    X = int(cand_ids.shape[0])
    D = int(cand_emb.shape[1])
    out_prefix = tuple(int(d) for d in positive_ids.shape) + (int(num_to_sample),)
    S = int(np.prod(out_prefix)) if len(out_prefix) > 0 else 1

    if X == 0 or S == 0:
        # torch path returns uninitialized tensors; return zeros deterministically.
        return (jnp.zeros(out_prefix, cand_ids.dtype),
                jnp.zeros(out_prefix + (D,), cand_emb.dtype))

    # ---- tiling ----
    TS = _pick_ts(S)                         # samples per grid step (sublane axis)
    S_pad = _round_up(S, TS)
    TX = min(512, _round_up(X, 128))         # candidate block (MXU contraction K)
    X_pad = _round_up(X, TX)
    D_pad = _round_up(D, 128)                # lane-dense output / MXU N dim

    # ---- random indices (wrapper; shared by the id gather and the kernel) ----
    pos = jnp.arange(S_pad, dtype=jnp.int32)
    idx = _uniform_indices(jnp.uint32(seed), pos, X)               # (S_pad,) in [0, X)

    # Cheap id gather stays in the wrapper (preserves cand_ids dtype, incl. int64).
    sampled_ids = jnp.take(cand_ids, idx[:S], axis=0).reshape(out_prefix)

    # Pad candidate table; padded rows/cols are never selected (idx < X <= X_pad).
    emb_p = cand_emb
    if X_pad != X or D_pad != D:
        emb_p = jnp.pad(cand_emb, ((0, X_pad - X), (0, D_pad - D)))
    idx_col = idx.reshape(S_pad, 1)                                # sublane-oriented

    grid = (S_pad // TS, X_pad // TX)        # sample axis parallel, X axis = reduction

    extra = {}
    if jax.default_backend() == "tpu":
        emb_b = int(np.dtype(cand_emb.dtype).itemsize)
        vmem_est = (2 * TX * D_pad * emb_b               # table blocks (double-buffered)
                    + 2 * TS * 128 * 4                   # idx blocks (lane-padded tiles)
                    + 2 * TS * D_pad * emb_b             # output blocks
                    + TS * D_pad * 4                     # f32 accumulator scratch
                    + 2 * TS * TX * 4)                   # one-hot temporaries headroom
        cap = 128 << 20
        try:
            cap = int(pltpu.get_tpu_info().vmem_capacity_bytes)
        except Exception:
            pass
        limit = int(min(int(0.75 * cap), max(32 << 20, 2 * vmem_est)))
        extra["compiler_params"] = pltpu.CompilerParams(
            dimension_semantics=("parallel", "arbitrary"),
            vmem_limit_bytes=limit)
        extra["cost_estimate"] = pl.CostEstimate(
            flops=2 * S_pad * X_pad * D_pad, transcendentals=0,
            bytes_accessed=(S_pad // TS) * X_pad * D_pad * emb_b
                           + S_pad * D_pad * emb_b + S_pad * 4)

    out_emb = pl.pallas_call(
        _emb_gather_kernel,
        grid=grid,
        in_specs=[
            pl.BlockSpec((TS, 1), lambda i, k: (i, 0)),       # sampled index column
            pl.BlockSpec((TX, D_pad), lambda i, k: (k, 0)),   # candidate table block
        ],
        out_specs=pl.BlockSpec((TS, D_pad), lambda i, k: (i, 0)),
        out_shape=jax.ShapeDtypeStruct((S_pad, D_pad), cand_emb.dtype),
        scratch_shapes=[pltpu.VMEM((TS, D_pad), jnp.float32)],
        **extra,
    )(idx_col, emb_p)

    sampled_emb = out_emb[:S, :D].reshape(out_prefix + (D,))
    return sampled_ids, sampled_emb


if __name__ == "__main__":
    key = jax.random.PRNGKey(0)
    k_emb, _ = jax.random.split(key)

    B, N = 2, 8              # positive_ids shape
    num_to_sample = 4
    X, D = 16, 32            # number of in-batch candidates, embedding dim

    positive_ids = jnp.arange(B * N, dtype=jnp.int32).reshape(B, N)
    cand_ids = 100 + jnp.arange(X, dtype=jnp.int32)           # unique candidate ids
    cand_emb = jax.random.normal(k_emb, (X, D), dtype=jnp.float32)

    sampled_ids, sampled_emb = in_batch_negatives_sample(
        positive_ids, num_to_sample, cand_ids, cand_emb, seed=42)
    jax.block_until_ready((sampled_ids, sampled_emb))

    # --- consistency checks ---
    assert sampled_ids.shape == (B, N, num_to_sample)
    assert sampled_emb.shape == (B, N, num_to_sample, D)

    ids_np = np.asarray(sampled_ids)
    emb_np = np.asarray(sampled_emb)
    cand_emb_np = np.asarray(cand_emb)

    # all sampled ids must come from the candidate set
    assert np.all((ids_np >= 100) & (ids_np < 100 + X))
    # sampled embeddings must be the rows matching the sampled ids
    idx_np = (ids_np - 100).reshape(-1)
    np.testing.assert_allclose(emb_np.reshape(-1, D), cand_emb_np[idx_np],
                               rtol=1e-6, atol=1e-6)
    # the sampler should hit more than one distinct candidate
    assert len(np.unique(ids_np)) > 1

    print("KERNEL_OK")
</pallas_src>

<mosaic_0001>
module attributes {stable_mosaic.version = 11 : i64} {
  func.func @_emb_gather_kernel(%arg0: i32, %arg1: i32, %arg2: memref<128x1xi32, #tpu.memory_space<vmem>>, %arg3: memref<128x128xf32, #tpu.memory_space<vmem>>, %arg4: memref<128x128xf32, #tpu.memory_space<vmem>>, %arg5: memref<128x128xf32, #tpu.memory_space<vmem>>) attributes {dimension_semantics = [#tpu.dimension_semantics<arbitrary>, #tpu.dimension_semantics<arbitrary>], iteration_bounds = array<i64: 1, 1>, scalar_prefetch = 0 : i64, scratch_operands = 1 : i64, tpu.core_type = #tpu.core_type<tc>, window_params = [{transform_indices = @transform_0, window_bounds = array<i64: 128, 1>}, {transform_indices = @transform_1, window_bounds = array<i64: 128, 128>}, {transform_indices = @transform_2, window_bounds = array<i64: 128, 128>}]} {
    %c0_i32 = arith.constant 0 : i32
    %0 = arith.cmpi eq, %arg1, %c0_i32 : i32
    %1 = arith.extui %0 : i1 to i32
    %c0_i32_0 = arith.constant 0 : i32
    %2 = arith.cmpi ne, %1, %c0_i32_0 : i32
    scf.if %2 {
      %cst_10 = arith.constant 0.000000e+00 : f32
      %21 = vector.broadcast %cst_10 : f32 to vector<128x128xf32>
      %c0_11 = arith.constant 0 : index
      %c0_12 = arith.constant 0 : index
      %22 = vector.load %arg5[%c0_11, %c0_12] : memref<128x128xf32, #tpu.memory_space<vmem>>, vector<128x128xf32>
      tpu.vector_store %arg5[%c0_11, %c0_12], %21 {strides = array<i32>} : memref<128x128xf32, #tpu.memory_space<vmem>>, vector<128x128xf32>,
    } else {
    }
    %3 = tpu.iota {dimensions = array<i32: 1>} : vector<1x128xi32>
    %c128_i32 = arith.constant 128 : i32
    %4 = arith.muli %arg1, %c128_i32 : i32
    %5 = vector.broadcast %4 : i32 to vector<1x128xi32>
    %6 = arith.addi %3, %5 : vector<1x128xi32>
    %c0 = arith.constant 0 : index
    %c0_1 = arith.constant 0 : index
    %7 = vector.load %arg2[%c0, %c0_1] : memref<128x1xi32, #tpu.memory_space<vmem>>, vector<128x1xi32>
    %8 = vector.broadcast %7 : vector<128x1xi32> to vector<128x128xi32>
    %9 = vector.broadcast %6 : vector<1x128xi32> to vector<128x128xi32>
    %10 = arith.cmpi eq, %8, %9 : vector<128x128xi32>
    %11 = arith.extui %10 : vector<128x128xi1> to vector<128x128xi32>
    %12 = arith.sitofp %11 : vector<128x128xi32> to vector<128x128xf32>
    %c0_2 = arith.constant 0 : index
    %c0_3 = arith.constant 0 : index
    %13 = vector.load %arg5[%c0_2, %c0_3] : memref<128x128xf32, #tpu.memory_space<vmem>>, vector<128x128xf32>
    %c0_4 = arith.constant 0 : index
    %c0_5 = arith.constant 0 : index
    %14 = vector.load %arg3[%c0_4, %c0_5] : memref<128x128xf32, #tpu.memory_space<vmem>>, vector<128x128xf32>
    %cst = arith.constant dense<0.000000e+00> : vector<128x128xf32>
    %15 = tpu.matmul %12, %14, %cst {dimension_numbers = #tpu.dot_dimension_numbers<[1], [0], [0], [1], [0, 0, 1, 1], [], []>} : vector<128x128xf32>, vector<128x128xf32>, vector<128x128xf32> -> vector<128x128xf32>
    %16 = arith.addf %13, %15 : vector<128x128xf32>
    %c0_6 = arith.constant 0 : index
    %c0_7 = arith.constant 0 : index
    %17 = vector.load %arg5[%c0_6, %c0_7] : memref<128x128xf32, #tpu.memory_space<vmem>>, vector<128x128xf32>
    tpu.vector_store %arg5[%c0_6, %c0_7], %16 {strides = array<i32>} : memref<128x128xf32, #tpu.memory_space<vmem>>, vector<128x128xf32>,
    %c0_i32_8 = arith.constant 0 : i32
    %18 = arith.cmpi eq, %arg1, %c0_i32_8 : i32
    %19 = arith.extui %18 : i1 to i32
    %c0_i32_9 = arith.constant 0 : i32
    %20 = arith.cmpi ne, %19, %c0_i32_9 : i32
    scf.if %20 {
      %c0_10 = arith.constant 0 : index
      %c0_11 = arith.constant 0 : index
      %21 = vector.load %arg5[%c0_10, %c0_11] : memref<128x128xf32, #tpu.memory_space<vmem>>, vector<128x128xf32>
      %c0_12 = arith.constant 0 : index
      %c0_13 = arith.constant 0 : index
      %22 = vector.load %arg4[%c0_12, %c0_13] : memref<128x128xf32, #tpu.memory_space<vmem>>, vector<128x128xf32>
      tpu.vector_store %arg4[%c0_12, %c0_13], %21 {strides = array<i32>} : memref<128x128xf32, #tpu.memory_space<vmem>>, vector<128x128xf32>,
    } else {
    }
    return
  }
  func.func @transform_0(%arg0: i32, %arg1: i32) -> (i32, i32) {
    %c0_i32 = arith.constant 0 : i32
    %c0_i32_0 = arith.constant 0 : i32
    return %arg0, %c0_i32 : i32, i32
  }
  func.func @transform_1(%arg0: i32, %arg1: i32) -> (i32, i32) {
    %c0_i32 = arith.constant 0 : i32
    %c0_i32_0 = arith.constant 0 : i32
    return %arg1, %c0_i32 : i32, i32
  }
  func.func @transform_2(%arg0: i32, %arg1: i32) -> (i32, i32) {
    %c0_i32 = arith.constant 0 : i32
    %c0_i32_0 = arith.constant 0 : i32
    return %arg0, %c0_i32 : i32, i32
  }
}

</mosaic_0001>

<llo_original>
// kernel: tpu_custom_call.1
$region0: #{tpu_custom_call.1}
  #allocation0 [shape = 'u32[]', space=smem, size = 0x4, offset = 0x4, fixed_abs, tag = 'smem constant byte address 0x4 - core index']
  #allocation1 [shape = 'u32[72,128]{1,0:T(1,128)}', space=vmem, size = 0x9000, scoped, tag = 'internal scratch']
  #allocation2 [shape = 'f32[128,128]{1,0:T(8,128)}', space=vmem, size = 0x10000, scoped, tag = 'scratch operand']
  %s0 = inlined_call_operand.vmem [shape: s32[128,1], index: 0, kind: input, shape index: {}]
  %s1 = inlined_call_operand.vmem [shape: f32[128,128], index: 1, kind: input, shape index: {}]
  %s2 = inlined_call_operand.hbm [shape: f32[128,128], index: 2, kind: output, shape index: {}]
  %s3 = sld [smem:[#allocation0]]
  $region26: #{tpu_custom_call.1} parent=0
    _
  %s5 = ssub.s32 1, %s3
  %s6 = scalar_select 0, %s5, %s3
  $region1: #{tpu_custom_call.1} parent=0
    #allocation3 [shape = 'u8[65536]{0}', space=vmem, size = 0x10000, scoped, tag = 'output window, operand 0, single buffered']
    #allocation4 [shape = 's32[1]{0}', space=sflag, size = 0x4, scoped, tag = 'scoped memory for tpu_custom_call.1']
    %7 = vsyncpa [#allocation4], 0
    // Predicated region
    $region2: #{tpu_custom_call.1} parent=1 // pred_check
      _
    $region3: #{tpu_custom_call.1} parent=1 // pred_check_branch
      %9 = sbr.rel (0) target = $region5
    $region4: #{tpu_custom_call.1} parent=1 // pred_region
      _
    $region5: #{tpu_custom_call.1} parent=1 // pred_fallthru
      _
    // Predicated region
    $region6: #{tpu_custom_call.1} parent=1 // pred_check
      _
    $region7: #{tpu_custom_call.1} parent=1 // pred_check_branch
      %11 = sbr.rel (0) target = $region9
    $region8: #{tpu_custom_call.1} parent=1 // pred_region
      _
    $region9: #{tpu_custom_call.1} parent=1 // pred_fallthru
      _
    %p12 = scmp.eq.s32.totalorder 0, 0
    // Predicated region
    $region10: #{tpu_custom_call.1} parent=1 // pred_check
      %p13 = pneg %p12
    $region11: #{tpu_custom_call.1} parent=1 // pred_check_branch
      %15 = sbr.rel (%p13) target = $region13
    $region12: #{tpu_custom_call.1} parent=1 // pred_region
      %16 = vst [vmem:[#allocation2] sm:$0xff] 0.0
      %17 = vst [vmem:[#allocation2 + $0x8] sm:$0xff] 0.0
      %18 = vst [vmem:[#allocation2 + $0x10] sm:$0xff] 0.0
      %19 = vst [vmem:[#allocation2 + $0x18] sm:$0xff] 0.0
      %20 = vst [vmem:[#allocation2 + $0x20] sm:$0xff] 0.0
      %21 = vst [vmem:[#allocation2 + $0x28] sm:$0xff] 0.0
      %22 = vst [vmem:[#allocation2 + $0x30] sm:$0xff] 0.0
      %23 = vst [vmem:[#allocation2 + $0x38] sm:$0xff] 0.0
      %24 = vst [vmem:[#allocation2 + $0x40] sm:$0xff] 0.0
      %25 = vst [vmem:[#allocation2 + $0x48] sm:$0xff] 0.0
      %26 = vst [vmem:[#allocation2 + $0x50] sm:$0xff] 0.0
      %27 = vst [vmem:[#allocation2 + $0x58] sm:$0xff] 0.0
      %28 = vst [vmem:[#allocation2 + $0x60] sm:$0xff] 0.0
      %29 = vst [vmem:[#allocation2 + $0x68] sm:$0xff] 0.0
      %30 = vst [vmem:[#allocation2 + $0x70] sm:$0xff] 0.0
      %31 = vst [vmem:[#allocation2 + $0x78] sm:$0xff] 0.0
    $region13: #{tpu_custom_call.1} parent=1 // pred_fallthru
      _
    %v32 = vlaneseq
    %v33 = vand.u32 %v32, 127
    %s34 = smul.u32 0, 128
    %v35 = vstv %s34
    %v36 = vadd.s32 %v33, %v35
    %v37 = vld [vmem:[%s0] sm:$0xff]
    %v38 = vld [vmem:[%s0 + $0x8] sm:$0xff]
    %v39 = vld [vmem:[%s0 + $0x10] sm:$0xff]
    %v40 = vld [vmem:[%s0 + $0x18] sm:$0xff]
    %v41 = vld [vmem:[%s0 + $0x20] sm:$0xff]
    %v42 = vld [vmem:[%s0 + $0x28] sm:$0xff]
    %v43 = vld [vmem:[%s0 + $0x30] sm:$0xff]
    %v44 = vld [vmem:[%s0 + $0x38] sm:$0xff]
    %v45 = vld [vmem:[%s0 + $0x40] sm:$0xff]
    %v46 = vld [vmem:[%s0 + $0x48] sm:$0xff]
    %v47 = vld [vmem:[%s0 + $0x50] sm:$0xff]
    %v48 = vld [vmem:[%s0 + $0x58] sm:$0xff]
    %v49 = vld [vmem:[%s0 + $0x60] sm:$0xff]
    %v50 = vld [vmem:[%s0 + $0x68] sm:$0xff]
    %v51 = vld [vmem:[%s0 + $0x70] sm:$0xff]
    %v52 = vld [vmem:[%s0 + $0x78] sm:$0xff]
    %53 = vset.pattern.permute.xlu0 0
    %54 = vperm.xlu0 %53, %v37
    %v55 = vpop.permute.xlu0 %54
    %56 = vset.pattern.permute.xlu0 0
    %57 = vperm.xlu0 %56, %v38
    %v58 = vpop.permute.xlu0 %57
    %59 = vset.pattern.permute.xlu0 0
    %60 = vperm.xlu0 %59, %v39
    %v61 = vpop.permute.xlu0 %60
    %62 = vset.pattern.permute.xlu0 0
    %63 = vperm.xlu0 %62, %v40
    %v64 = vpop.permute.xlu0 %63
    %65 = vset.pattern.permute.xlu0 0
    %66 = vperm.xlu0 %65, %v41
    %v67 = vpop.permute.xlu0 %66
    %68 = vset.pattern.permute.xlu0 0
    %69 = vperm.xlu0 %68, %v42
    %v70 = vpop.permute.xlu0 %69
    %71 = vset.pattern.permute.xlu0 0
    %72 = vperm.xlu0 %71, %v43
    %v73 = vpop.permute.xlu0 %72
    %74 = vset.pattern.permute.xlu0 0
    %75 = vperm.xlu0 %74, %v44
    %v76 = vpop.permute.xlu0 %75
    %77 = vset.pattern.permute.xlu0 0
    %78 = vperm.xlu0 %77, %v45
    %v79 = vpop.permute.xlu0 %78
    %80 = vset.pattern.permute.xlu0 0
    %81 = vperm.xlu0 %80, %v46
    %v82 = vpop.permute.xlu0 %81
    %83 = vset.pattern.permute.xlu0 0
    %84 = vperm.xlu0 %83, %v47
    %v85 = vpop.permute.xlu0 %84
    %86 = vset.pattern.permute.xlu0 0
    %87 = vperm.xlu0 %86, %v48
    %v88 = vpop.permute.xlu0 %87
    %89 = vset.pattern.permute.xlu0 0
    %90 = vperm.xlu0 %89, %v49
    %v91 = vpop.permute.xlu0 %90
    %92 = vset.pattern.permute.xlu0 0
    %93 = vperm.xlu0 %92, %v50
    %v94 = vpop.permute.xlu0 %93
    %95 = vset.pattern.permute.xlu0 0
    %96 = vperm.xlu0 %95, %v51
    %v97 = vpop.permute.xlu0 %96
    %98 = vset.pattern.permute.xlu0 0
    %99 = vperm.xlu0 %98, %v52
    %v100 = vpop.permute.xlu0 %99
    %vm101 = vcmp.eq.s32.totalorder %v55, %v36
    %vm102 = vcmp.eq.s32.totalorder %v58, %v36
    %vm103 = vcmp.eq.s32.totalorder %v61, %v36
    %vm104 = vcmp.eq.s32.totalorder %v64, %v36
    %vm105 = vcmp.eq.s32.totalorder %v67, %v36
    %vm106 = vcmp.eq.s32.totalorder %v70, %v36
    %vm107 = vcmp.eq.s32.totalorder %v73, %v36
    %vm108 = vcmp.eq.s32.totalorder %v76, %v36
    %vm109 = vcmp.eq.s32.totalorder %v79, %v36
    %vm110 = vcmp.eq.s32.totalorder %v82, %v36
    %vm111 = vcmp.eq.s32.totalorder %v85, %v36
    %vm112 = vcmp.eq.s32.totalorder %v88, %v36
    %vm113 = vcmp.eq.s32.totalorder %v91, %v36
    %vm114 = vcmp.eq.s32.totalorder %v94, %v36
    %vm115 = vcmp.eq.s32.totalorder %v97, %v36
    %vm116 = vcmp.eq.s32.totalorder %v100, %v36
    %v117 = vsel %vm101, 1, 0
    %v118 = vsel %vm102, 1, 0
    %v119 = vsel %vm103, 1, 0
    %v120 = vsel %vm104, 1, 0
    %v121 = vsel %vm105, 1, 0
    %v122 = vsel %vm106, 1, 0
    %v123 = vsel %vm107, 1, 0
    %v124 = vsel %vm108, 1, 0
    %v125 = vsel %vm109, 1, 0
    %v126 = vsel %vm110, 1, 0
    %v127 = vsel %vm111, 1, 0
    %v128 = vsel %vm112, 1, 0
    %v129 = vsel %vm113, 1, 0
    %v130 = vsel %vm114, 1, 0
    %v131 = vsel %vm115, 1, 0
    %v132 = vsel %vm116, 1, 0
    %v133 = vcvt.s32.f32 %v117
    %v134 = vcvt.s32.f32 %v118
    %v135 = vcvt.s32.f32 %v119
    %v136 = vcvt.s32.f32 %v120
    %v137 = vcvt.s32.f32 %v121
    %v138 = vcvt.s32.f32 %v122
    %v139 = vcvt.s32.f32 %v123
    %v140 = vcvt.s32.f32 %v124
    %v141 = vcvt.s32.f32 %v125
    %v142 = vcvt.s32.f32 %v126
    %v143 = vcvt.s32.f32 %v127
    %v144 = vcvt.s32.f32 %v128
    %v145 = vcvt.s32.f32 %v129
    %v146 = vcvt.s32.f32 %v130
    %v147 = vcvt.s32.f32 %v131
    %v148 = vcvt.s32.f32 %v132
    %v149 = vld [vmem:[#allocation2] sm:$0xff]
    %v150 = vld [vmem:[#allocation2 + $0x8] sm:$0xff]
    %v151 = vld [vmem:[#allocation2 + $0x10] sm:$0xff]
    %v152 = vld [vmem:[#allocation2 + $0x18] sm:$0xff]
    %v153 = vld [vmem:[#allocation2 + $0x20] sm:$0xff]
    %v154 = vld [vmem:[#allocation2 + $0x28] sm:$0xff]
    %v155 = vld [vmem:[#allocation2 + $0x30] sm:$0xff]
    %v156 = vld [vmem:[#allocation2 + $0x38] sm:$0xff]
    %v157 = vld [vmem:[#allocation2 + $0x40] sm:$0xff]
    %v158 = vld [vmem:[#allocation2 + $0x48] sm:$0xff]
    %v159 = vld [vmem:[#allocation2 + $0x50] sm:$0xff]
    %v160 = vld [vmem:[#allocation2 + $0x58] sm:$0xff]
    %v161 = vld [vmem:[#allocation2 + $0x60] sm:$0xff]
    %v162 = vld [vmem:[#allocation2 + $0x68] sm:$0xff]
    %v163 = vld [vmem:[#allocation2 + $0x70] sm:$0xff]
    %v164 = vld [vmem:[#allocation2 + $0x78] sm:$0xff]
    %v165 = vld [vmem:[%s1] sm:$0xff]
    %v166 = vld [vmem:[%s1 + $0x8] sm:$0xff]
    %v167 = vld [vmem:[%s1 + $0x10] sm:$0xff]
    %v168 = vld [vmem:[%s1 + $0x18] sm:$0xff]
    %v169 = vld [vmem:[%s1 + $0x20] sm:$0xff]
    %v170 = vld [vmem:[%s1 + $0x28] sm:$0xff]
    %v171 = vld [vmem:[%s1 + $0x30] sm:$0xff]
    %v172 = vld [vmem:[%s1 + $0x38] sm:$0xff]
    %v173 = vld [vmem:[%s1 + $0x40] sm:$0xff]
    %v174 = vld [vmem:[%s1 + $0x48] sm:$0xff]
    %v175 = vld [vmem:[%s1 + $0x50] sm:$0xff]
    %v176 = vld [vmem:[%s1 + $0x58] sm:$0xff]
    %v177 = vld [vmem:[%s1 + $0x60] sm:$0xff]
    %v178 = vld [vmem:[%s1 + $0x68] sm:$0xff]
    %v179 = vld [vmem:[%s1 + $0x70] sm:$0xff]
    %v180 = vld [vmem:[%s1 + $0x78] sm:$0xff]
    %181 = vmatpush.msra.mxu0 %v180
    %182 = vmatpush.msra.mxu0 %v179
    %183 = vmatpush.msra.mxu0 %v178
    %184 = vmatpush.msra.mxu0 %v177
    %185 = vmatpush.msra.mxu0 %v176
    %186 = vmatpush.msra.mxu0 %v175
    %187 = vmatpush.msra.mxu0 %v174
    %188 = vmatpush.msra.mxu0 %v173
    %189 = vmatpush.msra.mxu0 %v172
    %190 = vmatpush.msra.mxu0 %v171
    %191 = vmatpush.msra.mxu0 %v170
    %192 = vmatpush.msra.mxu0 %v169
    %193 = vmatpush.msra.mxu0 %v168
    %194 = vmatpush.msra.mxu0 %v167
    %195 = vmatpush.msra.mxu0 %v166
    %196 = vmatpush.msra.mxu0 %v165
    %197 = vmatmul.f32.gmra.mxu0 %v133
    %v198 = vpop.f32.mrf.mxu0
    %v199 = vadd.f32 0.0, %v198
    %200 = vmatmul.f32.gmra.mxu0 %v134
    %v201 = vpop.f32.mrf.mxu0
    %v202 = vadd.f32 0.0, %v201
    %203 = vmatmul.f32.gmra.mxu0 %v135
    %v204 = vpop.f32.mrf.mxu0
    %v205 = vadd.f32 0.0, %v204
    %206 = vmatmul.f32.gmra.mxu0 %v136
    %v207 = vpop.f32.mrf.mxu0
    %v208 = vadd.f32 0.0, %v207
    %209 = vmatmul.f32.gmra.mxu0 %v137
    %v210 = vpop.f32.mrf.mxu0
    %v211 = vadd.f32 0.0, %v210
    %212 = vmatmul.f32.gmra.mxu0 %v138
    %v213 = vpop.f32.mrf.mxu0
    %v214 = vadd.f32 0.0, %v213
    %215 = vmatmul.f32.gmra.mxu0 %v139
    %v216 = vpop.f32.mrf.mxu0
    %v217 = vadd.f32 0.0, %v216
    %218 = vmatmul.f32.gmra.mxu0 %v140
    %v219 = vpop.f32.mrf.mxu0
    %v220 = vadd.f32 0.0, %v219
    %221 = vmatmul.f32.gmra.mxu0 %v141
    %v222 = vpop.f32.mrf.mxu0
    %v223 = vadd.f32 0.0, %v222
    %224 = vmatmul.f32.gmra.mxu0 %v142
    %v225 = vpop.f32.mrf.mxu0
    %v226 = vadd.f32 0.0, %v225
    %227 = vmatmul.f32.gmra.mxu0 %v143
    %v228 = vpop.f32.mrf.mxu0
    %v229 = vadd.f32 0.0, %v228
    %230 = vmatmul.f32.gmra.mxu0 %v144
    %v231 = vpop.f32.mrf.mxu0
    %v232 = vadd.f32 0.0, %v231
    %233 = vmatmul.f32.gmra.mxu0 %v145
    %v234 = vpop.f32.mrf.mxu0
    %v235 = vadd.f32 0.0, %v234
    %236 = vmatmul.f32.gmra.mxu0 %v146
    %v237 = vpop.f32.mrf.mxu0
    %v238 = vadd.f32 0.0, %v237
    %239 = vmatmul.f32.gmra.mxu0 %v147
    %v240 = vpop.f32.mrf.mxu0
    %v241 = vadd.f32 0.0, %v240
    %242 = vmatmul.f32.gmra.mxu0 %v148
    %v243 = vpop.f32.mrf.mxu0
    %v244 = vadd.f32 0.0, %v243
    %245 = vdwg.mxu0
    %v246 = vadd.f32 %v149, %v199
    %v247 = vadd.f32 %v150, %v202
    %v248 = vadd.f32 %v151, %v205
    %v249 = vadd.f32 %v152, %v208
    %v250 = vadd.f32 %v153, %v211
    %v251 = vadd.f32 %v154, %v214
    %v252 = vadd.f32 %v155, %v217
    %v253 = vadd.f32 %v156, %v220
    %v254 = vadd.f32 %v157, %v223
    %v255 = vadd.f32 %v158, %v226
    %v256 = vadd.f32 %v159, %v229
    %v257 = vadd.f32 %v160, %v232
    %v258 = vadd.f32 %v161, %v235
    %v259 = vadd.f32 %v162, %v238
    %v260 = vadd.f32 %v163, %v241
    %v261 = vadd.f32 %v164, %v244
    %262 = vst [vmem:[#allocation2] sm:$0xff] %v246
    %263 = vst [vmem:[#allocation2 + $0x8] sm:$0xff] %v247
    %264 = vst [vmem:[#allocation2 + $0x10] sm:$0xff] %v248
    %265 = vst [vmem:[#allocation2 + $0x18] sm:$0xff] %v249
    %266 = vst [vmem:[#allocation2 + $0x20] sm:$0xff] %v250
    %267 = vst [vmem:[#allocation2 + $0x28] sm:$0xff] %v251
    %268 = vst [vmem:[#allocation2 + $0x30] sm:$0xff] %v252
    %269 = vst [vmem:[#allocation2 + $0x38] sm:$0xff] %v253
    %270 = vst [vmem:[#allocation2 + $0x40] sm:$0xff] %v254
    %271 = vst [vmem:[#allocation2 + $0x48] sm:$0xff] %v255
    %272 = vst [vmem:[#allocation2 + $0x50] sm:$0xff] %v256
    %273 = vst [vmem:[#allocation2 + $0x58] sm:$0xff] %v257
    %274 = vst [vmem:[#allocation2 + $0x60] sm:$0xff] %v258
    %275 = vst [vmem:[#allocation2 + $0x68] sm:$0xff] %v259
    %276 = vst [vmem:[#allocation2 + $0x70] sm:$0xff] %v260
    %277 = vst [vmem:[#allocation2 + $0x78] sm:$0xff] %v261
    // Predicated region
    $region14: #{tpu_custom_call.1} parent=1 // pred_check
      %p278 = pneg %p12
    $region15: #{tpu_custom_call.1} parent=1 // pred_check_branch
      %280 = sbr.rel (%p278) target = $region17
    $region16: #{tpu_custom_call.1} parent=1 // pred_region
      %v281 = vld [vmem:[#allocation2] sm:$0xff]
      %v282 = vld [vmem:[#allocation2 + $0x8] sm:$0xff]
      %v283 = vld [vmem:[#allocation2 + $0x10] sm:$0xff]
      %v284 = vld [vmem:[#allocation2 + $0x18] sm:$0xff]
      %v285 = vld [vmem:[#allocation2 + $0x20] sm:$0xff]
      %v286 = vld [vmem:[#allocation2 + $0x28] sm:$0xff]
      %v287 = vld [vmem:[#allocation2 + $0x30] sm:$0xff]
      %v288 = vld [vmem:[#allocation2 + $0x38] sm:$0xff]
      %v289 = vld [vmem:[#allocation2 + $0x40] sm:$0xff]
      %v290 = vld [vmem:[#allocation2 + $0x48] sm:$0xff]
      %v291 = vld [vmem:[#allocation2 + $0x50] sm:$0xff]
      %v292 = vld [vmem:[#allocation2 + $0x58] sm:$0xff]
      %v293 = vld [vmem:[#allocation2 + $0x60] sm:$0xff]
      %v294 = vld [vmem:[#allocation2 + $0x68] sm:$0xff]
      %v295 = vld [vmem:[#allocation2 + $0x70] sm:$0xff]
      %v296 = vld [vmem:[#allocation2 + $0x78] sm:$0xff]
      %297 = vst [vmem:[#allocation3] sm:$0xff] %v281
      %298 = vst [vmem:[#allocation3 + $0x8] sm:$0xff] %v282
      %299 = vst [vmem:[#allocation3 + $0x10] sm:$0xff] %v283
      %300 = vst [vmem:[#allocation3 + $0x18] sm:$0xff] %v284
      %301 = vst [vmem:[#allocation3 + $0x20] sm:$0xff] %v285
      %302 = vst [vmem:[#allocation3 + $0x28] sm:$0xff] %v286
      %303 = vst [vmem:[#allocation3 + $0x30] sm:$0xff] %v287
      %304 = vst [vmem:[#allocation3 + $0x38] sm:$0xff] %v288
      %305 = vst [vmem:[#allocation3 + $0x40] sm:$0xff] %v289
      %306 = vst [vmem:[#allocation3 + $0x48] sm:$0xff] %v290
      %307 = vst [vmem:[#allocation3 + $0x50] sm:$0xff] %v291
      %308 = vst [vmem:[#allocation3 + $0x58] sm:$0xff] %v292
      %309 = vst [vmem:[#allocation3 + $0x60] sm:$0xff] %v293
      %310 = vst [vmem:[#allocation3 + $0x68] sm:$0xff] %v294
      %311 = vst [vmem:[#allocation3 + $0x70] sm:$0xff] %v295
      %312 = vst [vmem:[#allocation3 + $0x78] sm:$0xff] %v296
    $region17: #{tpu_custom_call.1} parent=1 // pred_fallthru
      _
    // Predicated region
    $region18: #{tpu_custom_call.1} parent=1 // pred_check
      _
    $region19: #{tpu_custom_call.1} parent=1 // pred_check_branch
      %314 = sbr.rel (0) target = $region21
    $region20: #{tpu_custom_call.1} parent=1 // pred_region
      %316 = vsyncadd [#allocation4], 0
      %s317 = sshll.u32 [#allocation3], 4
      %s318 = int_to_ptr.vmem [resolvable:$true] %s317
      %s319 = sshll.u32 %s2, 4
      %s320 = int_to_ptr.hbm [resolvable:$true] %s319
      %325 = dma.vmem_to_hbm [thread:$0]  %s318, 2048, %s320, [#allocation4], 128, 128, 8
    $region21: #{tpu_custom_call.1} parent=1 // pred_fallthru
      _
    // Predicated region
    $region22: #{tpu_custom_call.1} parent=1 // pred_check
      _
    $region23: #{tpu_custom_call.1} parent=1 // pred_check_branch
      %327 = sbr.rel (0) target = $region25
    $region24: #{tpu_custom_call.1} parent=1 // pred_region
      %329 = dma.done [#allocation4], 2048
    $region25: #{tpu_custom_call.1} parent=1 // pred_fallthru
      _
    %330 = vsyncpa [#allocation4], 1

</llo_original>
